<compile_context>
chip_gen: v7x
topology: tpu7x:2x2x1
jax: 0.10.0
libtpu: 0.0.40
codegen_flags: <defaults>
</compile_context>

<pallas_src>
import jax
import jax.numpy as jnp
from jax.experimental import pallas as pl
from jax.experimental.pallas import tpu as pltpu


def _attention_block_kernel(x_ref, w1_ref, b1_ref, w2t_ref, b2_ref, o_ref):
    # x_ref / o_ref: (Bb, T, F); w1: (F, H); b1: (1, H); w2t: (1, H); b2: (1, 1)
    Bb, T, F = x_ref.shape
    x = x_ref[...]                                           # (Bb, T, F)

    # --- Linear 1 + tanh: fold Bb*T into the MXU M dimension -----------------
    # (layout-free reshape: F stays the minor/lane dim)
    x2d = x.reshape(Bb * T, F)
    h = jnp.tanh(
        jnp.dot(x2d, w1_ref[...], preferred_element_type=jnp.float32)
        + b1_ref[...]                                        # (1, H) broadcast
    )                                                        # (Bb*T, H) f32

    # --- Linear 2 (H -> 1): VPU multiply + lane reduce instead of an N=1 matmul
    logits = (
        jnp.sum(h * w2t_ref[...], axis=-1, keepdims=True)    # (Bb*T, 1)
        + b2_ref[...]                                        # (1, 1) broadcast
    )
    logits = logits.reshape(Bb, T, 1)                        # (Bb, T, 1)

    # --- Softmax over the time axis (dim=1), max-subtracted -------------------
    m = jnp.max(logits, axis=1, keepdims=True)               # (Bb, 1, 1)
    e = jnp.exp(logits - m)                                  # (Bb, T, 1)
    denom = jnp.sum(e, axis=1, keepdims=True)                # (Bb, 1, 1)
    attn = e * pl.reciprocal(denom, approx=True)             # (Bb, T, 1)

    # --- Reweight: broadcast (Bb, T, 1) along the F (lane) axis ---------------
    o_ref[...] = (x * attn.astype(x.dtype)).astype(o_ref.dtype)


def _choose_block_batch(B, T, F, itemsize, vmem_budget_bytes=24 << 20, min_grid=2):
    """Largest divisor Bb of B whose double-buffered in+out blocks fit the VMEM
    budget; prefer >= min_grid grid steps (v7x has 2 TensorCores; harmless on
    single-TC v5e/v6e)."""
    divisors = [d for d in range(1, B + 1) if B % d == 0]
    fitting = [d for d in divisors
               if 4 * d * T * F * itemsize <= vmem_budget_bytes] or [1]
    block_b = fitting[-1]
    while B // block_b < min_grid and block_b > 1:
        smaller = [d for d in fitting if d < block_b]
        if not smaller:
            break
        block_b = smaller[-1]
    return block_b


def attention_block(x, w1, b1, w2, b2, *, block_b=None, vmem_limit_bytes=None):
    """x: (B, T, F). w1: (F, H), b1: (H,), w2: (H, 1), b2: (1,)."""
    B, T, F = x.shape
    H = w1.shape[1]
    itemsize = jnp.dtype(x.dtype).itemsize

    if block_b is None:
        block_b = _choose_block_batch(B, T, F, itemsize)
    assert B % block_b == 0, "block_b must divide B"
    grid_b = B // block_b

    b1_2d = b1.reshape(1, H)
    w2_row = w2.reshape(1, H)      # (H, 1) -> (1, H) broadcast row
    b2_2d = b2.reshape(1, 1)

    if vmem_limit_bytes is None:
        block_bytes = block_b * T * F * itemsize
        # in + out, double-buffered, plus weights and slack; cap well below
        # v7x's 64 MiB physical VMEM so the same config runs everywhere.
        needed = 4 * block_bytes + 2 * (F * H + 3 * H + 1) * 4 + (4 << 20)
        vmem_limit_bytes = int(min(max(needed, 16 << 20), 48 << 20))

    grid_spec = pltpu.PrefetchScalarGridSpec(
        num_scalar_prefetch=0,
        grid=(grid_b,),
        in_specs=[
            pl.BlockSpec((block_b, T, F), lambda b: (b, 0, 0)),  # x
            pl.BlockSpec((F, H), lambda b: (0, 0)),              # w1 (full)
            pl.BlockSpec((1, H), lambda b: (0, 0)),              # b1
            pl.BlockSpec((1, H), lambda b: (0, 0)),              # w2^T
            pl.BlockSpec((1, 1), lambda b: (0, 0)),              # b2
        ],
        out_specs=pl.BlockSpec((block_b, T, F), lambda b: (b, 0, 0)),
    )

    return pl.pallas_call(
        _attention_block_kernel,
        out_shape=jax.ShapeDtypeStruct((B, T, F), x.dtype),
        grid_spec=grid_spec,
        compiler_params=pltpu.CompilerParams(
            dimension_semantics=("parallel",),
            vmem_limit_bytes=vmem_limit_bytes,
        ),
    )(x, w1, b1_2d, w2_row, b2_2d)
    # TODO(synk): for T too long to hold one (Bb, T, F) slab in VMEM (esp. v7x,
    # 64 MiB), add a T grid axis ("arbitrary") with a two-pass/online softmax.


def attention_block_ref(x, w1, b1, w2, b2):
    """Pure-JAX reference matching the PyTorch forward exactly."""
    h = jnp.tanh(jnp.einsum("btf,fh->bth", x, w1) + b1)           # (B, T, H)
    logits = jnp.einsum("bth,ho->bto", h, w2) + b2                # (B, T, 1)
    attn_w = jax.nn.softmax(logits, axis=1)                       # softmax over T
    return x * attn_w


if __name__ == "__main__":
    B, T, F = 4, 8, 32
    H = F // 2  # attention_hidden_dim default = feature_dim // 2

    key = jax.random.PRNGKey(0)
    kx, kw1, kb1, kw2, kb2 = jax.random.split(key, 5)

    x = jax.random.normal(kx, (B, T, F), dtype=jnp.float32)
    # PyTorch Linear shapes are w1 (H, F), w2 (1, H); stored here already
    # transposed for the x @ w convention.
    bound1 = 1.0 / (F ** 0.5)
    bound2 = 1.0 / (H ** 0.5)
    w1 = jax.random.uniform(kw1, (F, H), jnp.float32, -bound1, bound1)
    b1 = jax.random.uniform(kb1, (H,), jnp.float32, -bound1, bound1)
    w2 = jax.random.uniform(kw2, (H, 1), jnp.float32, -bound2, bound2)
    b2 = jax.random.uniform(kb2, (1,), jnp.float32, -bound2, bound2)

    out = jax.block_until_ready(attention_block(x, w1, b1, w2, b2))
    ref = attention_block_ref(x, w1, b1, w2, b2)

    assert out.shape == (B, T, F)
    # Tolerance accommodates the EUP approximate reciprocal in the softmax
    # normalizer (pl.reciprocal(..., approx=True)); values are O(1).
    assert jnp.allclose(out, ref, atol=1e-3, rtol=1e-3), "mismatch vs reference"

    print("KERNEL_OK")
</pallas_src>

<mosaic_0001>
module attributes {stable_mosaic.version = 11 : i64} {
  func.func @_attention_block_kernel(%arg0: i32, %arg1: memref<2x8x32xf32, #tpu.memory_space<vmem>>, %arg2: memref<32x16xf32, #tpu.memory_space<vmem>>, %arg3: memref<1x16xf32, #tpu.memory_space<vmem>>, %arg4: memref<1x16xf32, #tpu.memory_space<vmem>>, %arg5: memref<1x1xf32, #tpu.memory_space<vmem>>, %arg6: memref<2x8x32xf32, #tpu.memory_space<vmem>>) attributes {dimension_semantics = [#tpu.dimension_semantics<parallel>], iteration_bounds = array<i64: 2>, scalar_prefetch = 0 : i64, scratch_operands = 0 : i64, tpu.core_type = #tpu.core_type<tc>, window_params = [{transform_indices = @transform_0, window_bounds = array<i64: 2, 8, 32>}, {pipeline_mode = #tpu.pipeline_mode<synchronous>, transform_indices = @transform_1, window_bounds = array<i64: 32, 16>}, {pipeline_mode = #tpu.pipeline_mode<synchronous>, transform_indices = @transform_2, window_bounds = array<i64: 1, 16>}, {pipeline_mode = #tpu.pipeline_mode<synchronous>, transform_indices = @transform_3, window_bounds = array<i64: 1, 16>}, {pipeline_mode = #tpu.pipeline_mode<synchronous>, transform_indices = @transform_4, window_bounds = array<i64: 1, 1>}, {transform_indices = @transform_5, window_bounds = array<i64: 2, 8, 32>}]} {
    %c0 = arith.constant 0 : index
    %c0_0 = arith.constant 0 : index
    %c0_1 = arith.constant 0 : index
    %0 = vector.load %arg1[%c0, %c0_0, %c0_1] : memref<2x8x32xf32, #tpu.memory_space<vmem>>, vector<2x8x32xf32>
    %1 = vector.shape_cast %0 : vector<2x8x32xf32> to vector<16x32xf32>
    %c0_2 = arith.constant 0 : index
    %c0_3 = arith.constant 0 : index
    %2 = vector.load %arg2[%c0_2, %c0_3] : memref<32x16xf32, #tpu.memory_space<vmem>>, vector<32x16xf32>
    %cst = arith.constant dense<0.000000e+00> : vector<16x16xf32>
    %3 = tpu.matmul %1, %2, %cst {dimension_numbers = #tpu.dot_dimension_numbers<[1], [0], [0], [1], [0, 0, 1, 1], [], []>} : vector<16x32xf32>, vector<32x16xf32>, vector<16x16xf32> -> vector<16x16xf32>
    %c0_4 = arith.constant 0 : index
    %c0_5 = arith.constant 0 : index
    %4 = vector.load %arg3[%c0_4, %c0_5] : memref<1x16xf32, #tpu.memory_space<vmem>>, vector<1x16xf32>
    %5 = vector.broadcast %4 : vector<1x16xf32> to vector<16x16xf32>
    %6 = arith.addf %3, %5 : vector<16x16xf32>
    %7 = math.tanh %6 : vector<16x16xf32>
    %c0_6 = arith.constant 0 : index
    %c0_7 = arith.constant 0 : index
    %8 = vector.load %arg4[%c0_6, %c0_7] : memref<1x16xf32, #tpu.memory_space<vmem>>, vector<1x16xf32>
    %9 = vector.broadcast %8 : vector<1x16xf32> to vector<16x16xf32>
    %10 = arith.mulf %7, %9 : vector<16x16xf32>
    %cst_8 = arith.constant dense<0.000000e+00> : vector<16xf32>
    %11 = vector.multi_reduction <add>, %10, %cst_8 [1] : vector<16x16xf32> to vector<16xf32>
    %12 = vector.shape_cast %11 : vector<16xf32> to vector<16x1xf32>
    %c0_9 = arith.constant 0 : index
    %c0_10 = arith.constant 0 : index
    %13 = vector.load %arg5[%c0_9, %c0_10] : memref<1x1xf32, #tpu.memory_space<vmem>>, vector<1x1xf32>
    %14 = vector.broadcast %13 : vector<1x1xf32> to vector<16x1xf32>
    %15 = arith.addf %12, %14 : vector<16x1xf32>
    %16 = vector.shape_cast %15 : vector<16x1xf32> to vector<2x8x1xf32>
    %cst_11 = arith.constant dense<0xFF800000> : vector<2x1xf32>
    %17 = vector.multi_reduction <maximumf>, %16, %cst_11 [1] : vector<2x8x1xf32> to vector<2x1xf32>
    %18 = vector.shape_cast %17 : vector<2x1xf32> to vector<2x1x1xf32>
    %19 = vector.broadcast %18 : vector<2x1x1xf32> to vector<2x8x1xf32>
    %20 = arith.subf %16, %19 : vector<2x8x1xf32>
    %21 = math.exp %20 : vector<2x8x1xf32>
    %cst_12 = arith.constant dense<0.000000e+00> : vector<2x1xf32>
    %22 = vector.multi_reduction <add>, %21, %cst_12 [1] : vector<2x8x1xf32> to vector<2x1xf32>
    %23 = vector.shape_cast %22 : vector<2x1xf32> to vector<2x1x1xf32>
    %24 = tpu.reciprocal %23 {approx = true} : vector<2x1x1xf32> -> vector<2x1x1xf32>
    %25 = vector.broadcast %24 : vector<2x1x1xf32> to vector<2x8x1xf32>
    %26 = arith.mulf %21, %25 : vector<2x8x1xf32>
    %27 = vector.broadcast %26 : vector<2x8x1xf32> to vector<2x8x32xf32>
    %28 = arith.mulf %0, %27 : vector<2x8x32xf32>
    %c0_13 = arith.constant 0 : index
    %c0_14 = arith.constant 0 : index
    %c0_15 = arith.constant 0 : index
    %29 = vector.load %arg6[%c0_13, %c0_14, %c0_15] : memref<2x8x32xf32, #tpu.memory_space<vmem>>, vector<2x8x32xf32>
    tpu.vector_store %arg6[%c0_13, %c0_14, %c0_15], %28 {strides = array<i32>} : memref<2x8x32xf32, #tpu.memory_space<vmem>>, vector<2x8x32xf32>,
    return
  }
  func.func @transform_0(%arg0: i32) -> (i32, i32, i32) {
    %c0_i32 = arith.constant 0 : i32
    %c0_i32_0 = arith.constant 0 : i32
    %c0_i32_1 = arith.constant 0 : i32
    return %arg0, %c0_i32, %c0_i32_0 : i32, i32, i32
  }
  func.func @transform_1(%arg0: i32) -> (i32, i32) {
    %c0_i32 = arith.constant 0 : i32
    %c0_i32_0 = arith.constant 0 : i32
    %c0_i32_1 = arith.constant 0 : i32
    return %c0_i32, %c0_i32_0 : i32, i32
  }
  func.func @transform_2(%arg0: i32) -> (i32, i32) {
    %c0_i32 = arith.constant 0 : i32
    %c0_i32_0 = arith.constant 0 : i32
    %c0_i32_1 = arith.constant 0 : i32
    return %c0_i32, %c0_i32_0 : i32, i32
  }
  func.func @transform_3(%arg0: i32) -> (i32, i32) {
    %c0_i32 = arith.constant 0 : i32
    %c0_i32_0 = arith.constant 0 : i32
    %c0_i32_1 = arith.constant 0 : i32
    return %c0_i32, %c0_i32_0 : i32, i32
  }
  func.func @transform_4(%arg0: i32) -> (i32, i32) {
    %c0_i32 = arith.constant 0 : i32
    %c0_i32_0 = arith.constant 0 : i32
    %c0_i32_1 = arith.constant 0 : i32
    return %c0_i32, %c0_i32_0 : i32, i32
  }
  func.func @transform_5(%arg0: i32) -> (i32, i32, i32) {
    %c0_i32 = arith.constant 0 : i32
    %c0_i32_0 = arith.constant 0 : i32
    %c0_i32_1 = arith.constant 0 : i32
    return %arg0, %c0_i32, %c0_i32_0 : i32, i32, i32
  }
}

</mosaic_0001>

<llo_original>
// kernel: tpu_custom_call.1
$region0: #{tpu_custom_call.1}
  #allocation0 [shape = 'u32[]', space=smem, size = 0x4, offset = 0x4, fixed_abs, tag = 'smem constant byte address 0x4 - core index']
  #allocation1 [shape = 'u32[144,128]{1,0:T(1,128)}', space=vmem, size = 0x12000, scoped, tag = 'internal scratch']
  #allocation2 [shape = 'f32[1,1]{1,0:T(1,128)S(1)}', space=vmem, size = 0x200, scoped, tag = 'scoped memory for tpu_custom_call.1']
  %s0 = inlined_call_operand.vmem [shape: f32[4,8,32], index: 0, kind: input, shape index: {}]
  %s1 = inlined_call_operand.vmem [shape: f32[32,16], index: 1, kind: input, shape index: {}]
  %s2 = inlined_call_operand.vmem [shape: f32[1,16], index: 2, kind: input, shape index: {}]
  %s3 = inlined_call_operand.vmem [shape: f32[1,16], index: 3, kind: input, shape index: {}]
  %s4 = inlined_call_operand.<no memory space> [shape: f32[1,1], index: 4, kind: input, shape index: {}]
  %s5 = inlined_call_operand.hbm [shape: f32[4,8,32], index: 5, kind: output, shape index: {}]
  %s6 = sld [smem:[#allocation0]]
  $region53: #{tpu_custom_call.1} parent=0
    _
  %s8 = ssub.s32 1, %s6
  %s9 = scalar_select 0, %s8, %s6
  %v10 = vstv %s4
  %11 = vst [vmem:[#allocation2] sm:$0x1] %v10
  $region1: #{tpu_custom_call.1} parent=0
    #allocation3 [shape = 'u8[16384]{0}', space=vmem, size = 0x4000, scoped, tag = 'output window, operand 0']
    #allocation4 [shape = 's32[2]{0}', space=sflag, size = 0x8, scoped, tag = 'scoped memory for tpu_custom_call.1']
    %12 = vsyncpa [#allocation4], 0
    %s13 = scalar_lea.sflag [#allocation4], 1
    %14 = vsyncpa %s13, 0
    loop: start=0, step=1, limit=4
    $region2: #{tpu_custom_call.1} parent=1 // loop_pre_header
      _
    $region3: #{tpu_custom_call.1} parent=1 // loop_header
      %s16 = sphi 0, %s20
      %p17 = scmp.ge.s32.totalorder %s16, 4
      %s26 = sphi 0, %s28
      %s29 = sphi 0, %s26
      %s30 = sphi 0, %s29
      %s46 = sphi 0, %s30
      %s50 = sphi 0, %s50
      %s52 = sphi 0, %s50
      %s53 = sphi 0, %s52
      %s67 = sphi 0, %s53
      %s71 = sphi 0, %s71
      %s73 = sphi 0, %s71
      %s74 = sphi 0, %s73
      %s88 = sphi 0, %s74
      %s92 = sphi 0, %s92
      %s94 = sphi 0, %s92
      %s95 = sphi 0, %s94
      %s109 = sphi 0, %s95
      %s113 = sphi 0, %s113
      %s115 = sphi 0, %s113
      %s116 = sphi 0, %s115
      %s130 = sphi 0, %s116
      %s136 = sphi 0, %s138
      %s139 = sphi 0, %s136
      %s140 = sphi 0, %s139
      %s156 = sphi 0, %s140
    $region4: #{tpu_custom_call.1} parent=1 // loop_header_branch
      %19 = sbr.rel (%p17) target = $region8
    $region5: #{tpu_custom_call.1} parent=1 // loop_body
      %s21 = ssub.s32 %s16, 1
      %s22 = ssub.s32 %s16, 2
      %s23 = sadd.s32 %s16, 1
      %s24 = ssub.s32 %s16, %s23
      %p25 = scmp.eq.s32.totalorder %s24, 0
      %s27 = sadd.s32 %s26, 1
      %s28 = scalar_select %p25, %s26, %s27
      %p31 = pneg %p25
      %p32 = scmp.eq.s32.totalorder %s16, 1
      %p33 = por %p31, %p32
      %p34 = scmp.ne.s32.totalorder %s26, %s29
      %p35 = scmp.eq.s32.totalorder %s16, 0
      %p36 = por %p34, %p35
      %p37 = scmp.ne.s32.totalorder %s26, %s29
      %p38 = scmp.eq.s32.totalorder %s21, 1
      %p39 = por %p37, %p38
      %p40 = scmp.ne.s32.totalorder %s29, %s30
      %p41 = scmp.eq.s32.totalorder %s21, 0
      %p42 = por %p40, %p41
      %p43 = scmp.ne.s32.totalorder %s29, %s30
      %p44 = scmp.eq.s32.totalorder %s22, 1
      %p45 = por %p43, %p44
      %p47 = scmp.ne.s32.totalorder %s30, %s46
      %p48 = scmp.eq.s32.totalorder %s22, 0
      %p49 = por %p47, %p48
      %s51 = sadd.s32 %s50, 1
      %p54 = scmp.eq.s32.totalorder %s16, 1
      %p55 = scmp.ne.s32.totalorder %s50, %s52
      %p56 = scmp.eq.s32.totalorder %s16, 0
      %p57 = por %p55, %p56
      %p58 = scmp.ne.s32.totalorder %s50, %s52
      %p59 = scmp.eq.s32.totalorder %s21, 1
      %p60 = por %p58, %p59
      %p61 = scmp.ne.s32.totalorder %s52, %s53
      %p62 = scmp.eq.s32.totalorder %s21, 0
      %p63 = por %p61, %p62
      %p64 = scmp.ne.s32.totalorder %s52, %s53
      %p65 = scmp.eq.s32.totalorder %s22, 1
      %p66 = por %p64, %p65
      %p68 = scmp.ne.s32.totalorder %s53, %s67
      %p69 = scmp.eq.s32.totalorder %s22, 0
      %p70 = por %p68, %p69
      %s72 = sadd.s32 %s71, 1
      %p75 = scmp.eq.s32.totalorder %s16, 1
      %p76 = scmp.ne.s32.totalorder %s71, %s73
      %p77 = scmp.eq.s32.totalorder %s16, 0
      %p78 = por %p76, %p77
      %p79 = scmp.ne.s32.totalorder %s71, %s73
      %p80 = scmp.eq.s32.totalorder %s21, 1
      %p81 = por %p79, %p80
      %p82 = scmp.ne.s32.totalorder %s73, %s74
      %p83 = scmp.eq.s32.totalorder %s21, 0
      %p84 = por %p82, %p83
      %p85 = scmp.ne.s32.totalorder %s73, %s74
      %p86 = scmp.eq.s32.totalorder %s22, 1
      %p87 = por %p85, %p86
      %p89 = scmp.ne.s32.totalorder %s74, %s88
      %p90 = scmp.eq.s32.totalorder %s22, 0
      %p91 = por %p89, %p90
      %s93 = sadd.s32 %s92, 1
      %p96 = scmp.eq.s32.totalorder %s16, 1
      %p97 = scmp.ne.s32.totalorder %s92, %s94
      %p98 = scmp.eq.s32.totalorder %s16, 0
      %p99 = por %p97, %p98
      %p100 = scmp.ne.s32.totalorder %s92, %s94
      %p101 = scmp.eq.s32.totalorder %s21, 1
      %p102 = por %p100, %p101
      %p103 = scmp.ne.s32.totalorder %s94, %s95
      %p104 = scmp.eq.s32.totalorder %s21, 0
      %p105 = por %p103, %p104
      %p106 = scmp.ne.s32.totalorder %s94, %s95
      %p107 = scmp.eq.s32.totalorder %s22, 1
      %p108 = por %p106, %p107
      %p110 = scmp.ne.s32.totalorder %s95, %s109
      %p111 = scmp.eq.s32.totalorder %s22, 0
      %p112 = por %p110, %p111
      %s114 = sadd.s32 %s113, 1
      %p117 = scmp.eq.s32.totalorder %s16, 1
      %p118 = scmp.ne.s32.totalorder %s113, %s115
      %p119 = scmp.eq.s32.totalorder %s16, 0
      %p120 = por %p118, %p119
      %p121 = scmp.ne.s32.totalorder %s113, %s115
      %p122 = scmp.eq.s32.totalorder %s21, 1
      %p123 = por %p121, %p122
      %p124 = scmp.ne.s32.totalorder %s115, %s116
      %p125 = scmp.eq.s32.totalorder %s21, 0
      %p126 = por %p124, %p125
      %p127 = scmp.ne.s32.totalorder %s115, %s116
      %p128 = scmp.eq.s32.totalorder %s22, 1
      %p129 = por %p127, %p128
      %p131 = scmp.ne.s32.totalorder %s116, %s130
      %p132 = scmp.eq.s32.totalorder %s22, 0
      %p133 = por %p131, %p132
      %s134 = ssub.s32 %s16, %s23
      %p135 = scmp.eq.s32.totalorder %s134, 0
      %s137 = sadd.s32 %s136, 1
      %s138 = scalar_select %p135, %s136, %s137
      %p141 = pneg %p135
      %p142 = scmp.eq.s32.totalorder %s16, 1
      %p143 = por %p141, %p142
      %p144 = scmp.ne.s32.totalorder %s136, %s139
      %p145 = scmp.eq.s32.totalorder %s16, 0
      %p146 = por %p144, %p145
      %p147 = scmp.ne.s32.totalorder %s136, %s139
      %p148 = scmp.eq.s32.totalorder %s21, 1
      %p149 = por %p147, %p148
      %p150 = scmp.ne.s32.totalorder %s139, %s140
      %p151 = scmp.eq.s32.totalorder %s21, 0
      %p152 = por %p150, %p151
      %p153 = scmp.ne.s32.totalorder %s139, %s140
      %p154 = scmp.eq.s32.totalorder %s22, 1
      %p155 = por %p153, %p154
      %p157 = scmp.ne.s32.totalorder %s140, %s156
      %p158 = scmp.eq.s32.totalorder %s22, 0
      %p159 = por %p157, %p158
      %p160 = scmp.le.s32.totalorder 1, %s16
      %p161 = scmp.lt.s32.totalorder %s16, 3
      %p162 = pnand %p160, %p161
      %p163 = pneg %p162
      // Predicated region
      $region9: #{tpu_custom_call.1} parent=5 // pred_check
        _
      $region10: #{tpu_custom_call.1} parent=5 // pred_check_branch
        %165 = sbr.rel (%p162) target = $region12
      $region11: #{tpu_custom_call.1} parent=5 // pred_region
        %s166 = ssub.s32 %s16, 1
        // Predicated region
        $region13: #{tpu_custom_call.1} parent=11 // pred_check
          %p167 = pneg %p63
        $region14: #{tpu_custom_call.1} parent=11 // pred_check_branch
          %169 = sbr.rel (%p167) target = $region16
        $region15: #{tpu_custom_call.1} parent=11 // pred_region
          _
        $region16: #{tpu_custom_call.1} parent=11 // pred_fallthru
          _
        // Predicated region
        $region17: #{tpu_custom_call.1} parent=11 // pred_check
          %p170 = pneg %p84
        $region18: #{tpu_custom_call.1} parent=11 // pred_check_branch
          %172 = sbr.rel (%p170) target = $region20
        $region19: #{tpu_custom_call.1} parent=11 // pred_region
          _
        $region20: #{tpu_custom_call.1} parent=11 // pred_fallthru
          _
        // Predicated region
        $region21: #{tpu_custom_call.1} parent=11 // pred_check
          %p173 = pneg %p105
        $region22: #{tpu_custom_call.1} parent=11 // pred_check_branch
          %175 = sbr.rel (%p173) target = $region24
        $region23: #{tpu_custom_call.1} parent=11 // pred_region
          _
        $region24: #{tpu_custom_call.1} parent=11 // pred_fallthru
          _
        // Predicated region
        $region25: #{tpu_custom_call.1} parent=11 // pred_check
          %p176 = pneg %p126
        $region26: #{tpu_custom_call.1} parent=11 // pred_check_branch
          %178 = sbr.rel (%p176) target = $region28
        $region27: #{tpu_custom_call.1} parent=11 // pred_region
          _
        $region28: #{tpu_custom_call.1} parent=11 // pred_fallthru
          _
      $region12: #{tpu_custom_call.1} parent=5 // pred_fallthru
        _
      %p179 = scmp.lt.s32.totalorder %s16, 2
      // Predicated region
      $region29: #{tpu_custom_call.1} parent=5 // pred_check
        %p180 = pneg %p179
      $region30: #{tpu_custom_call.1} parent=5 // pred_check_branch
        %182 = sbr.rel (%p180) target = $region32
      $region31: #{tpu_custom_call.1} parent=5 // pred_region
        // Predicated region
        $region33: #{tpu_custom_call.1} parent=31 // pred_check
          %p183 = pneg %p36
        $region34: #{tpu_custom_call.1} parent=31 // pred_check_branch
          %185 = sbr.rel (%p183) target = $region36
        $region35: #{tpu_custom_call.1} parent=31 // pred_region
          %s186 = smul.u32 2, %s16
          %p187 = scmp.lt.s32.totalorder %s186, 3
          %s188 = scalar_select %p187, %s186, 3
          %s189 = smul.addr %s188, 8
          %s190 = scalar_lea.vmem %s0, %s189
          %s191 = smul.u32 2, %s16
        $region36: #{tpu_custom_call.1} parent=31 // pred_fallthru
          _
      $region32: #{tpu_custom_call.1} parent=5 // pred_fallthru
        _
      %p192 = scmp.le.s32.totalorder 1, %s16
      %p193 = scmp.lt.s32.totalorder %s16, 3
      %p194 = pnand %p192, %p193
      %p195 = pneg %p194
      // Predicated region
      $region37: #{tpu_custom_call.1} parent=5 // pred_check
        _
      $region38: #{tpu_custom_call.1} parent=5 // pred_check_branch
        %197 = sbr.rel (%p194) target = $region40
      $region39: #{tpu_custom_call.1} parent=5 // pred_region
        %s198 = ssub.s32 %s16, 1
        %s199 = smul.u32 2, %s21
        %p200 = scmp.lt.s32.totalorder %s199, 3
        %s201 = scalar_select %p200, %s199, 3
        %s202 = smul.addr %s201, 8
        %s203 = scalar_lea.vmem %s0, %s202
        %p204 = pneg %p42
        %p205 = pneg %p39
        %p206 = pneg %p63
        %p207 = pneg %p60
        %p208 = pneg %p84
        %p209 = pneg %p81
        %p210 = pneg %p105
        %p211 = pneg %p102
        %p212 = pneg %p126
        %p213 = pneg %p123
        %p214 = pneg %p152
        %p215 = pneg %p149
        %s216 = sand.u32 %s139, 1
        %s217 = scalar_lea.sflag [#allocation4], %s216
        %s218 = sand.u32 %s139, 1
        %s219 = smul.addr %s218, 16
        %s220 = scalar_lea.vmem [#allocation3], %s219
        %s221 = smul.u32 2, %s21
        %p222 = scmp.lt.s32.totalorder %s221, 3
        %s223 = scalar_select %p222, %s221, 3
        %s224 = smul.addr %s223, 8
        %s225 = scalar_lea.vmem %s0, %s224
        %s226 = smul.u32 2, %s21
        %s227 = smul.u32 2, %s21
        %v228 = vld [vmem:[%s225] sm:$0xff]
        %v229 = vld [vmem:[%s225 + $0x8] sm:$0xff]
        %v230 = vld [vmem:[%s1] sm:$0xff]
        %v231 = vld [vmem:[%s1 + $0x8] sm:$0xff]
        %v232 = vld [vmem:[%s1 + $0x10] sm:$0xff]
        %v233 = vld [vmem:[%s1 + $0x18] sm:$0xff]
        %v234 = vld [vmem:[%s2] sm:$0x1]
        %v236 = vlaneseq
        %v237 = vshrl.u32 %v236, 7
        %v238 = vsub.s32 0, %v237
        %v239 = vrot.slane %v234, %v238
        %vm241 = vcmask 261120
        %v243 = vsel %vm241, %v228, 0
        %v246 = vsel %vm241, %v229, 0
        %248 = vmatprep.subr.mxu0 0.0
        %249 = vmatpush1.msra.mxu0 %v230
        %250 = vmatprep.subr.mxu0 0.0
        %251 = vmatpush1.msra.mxu0 %v231
        %252 = vmatprep.subr.mxu0 0.0
        %253 = vmatpush1.msra.mxu0 %v232
        %254 = vmatprep.subr.mxu0 0.0
        %255 = vmatpush1.msra.mxu0 %v233
        %256 = vmatprep.subr.mxu0 0.0
        %257 = vmatpush1.msra.mxu0 0.0
        %258 = vmatprep.subr.mxu0 0.0
        %259 = vmatpush1.msra.mxu0 0.0
        %260 = vmatprep.subr.mxu0 0.0
        %261 = vmatpush1.msra.mxu0 0.0
        %262 = vmatprep.subr.mxu0 0.0
        %263 = vmatpush1.msra.mxu0 0.0
        %264 = vmatprep.subr.mxu0 0.0
        %265 = vmatpush1.msra.mxu0 0.0
        %266 = vmatprep.subr.mxu0 0.0
        %267 = vmatpush1.msra.mxu0 0.0
        %268 = vmatprep.subr.mxu0 0.0
        %269 = vmatpush1.msra.mxu0 0.0
        %270 = vmatprep.subr.mxu0 0.0
        %271 = vmatpush1.msra.mxu0 0.0
        %272 = vmatprep.subr.mxu0 0.0
        %273 = vmatpush1.msra.mxu0 0.0
        %274 = vmatprep.subr.mxu0 0.0
        %275 = vmatpush1.msra.mxu0 0.0
        %276 = vmatprep.subr.mxu0 0.0
        %277 = vmatpush1.msra.mxu0 0.0
        %278 = vmatprep.subr.mxu0 0.0
        %279 = vmatpush1.msra.mxu0 0.0
        %280 = vmatprep.subr.mxu0 0.0
        %281 = vmatpush1.msra.mxu0 0.0
        %282 = vmatprep.subr.mxu0 0.0
        %283 = vmatpush1.msra.mxu0 0.0
        %284 = vmatprep.subr.mxu0 0.0
        %285 = vmatpush1.msra.mxu0 0.0
        %286 = vmatprep.subr.mxu0 0.0
        %287 = vmatpush1.msra.mxu0 0.0
        %288 = vmatprep.subr.mxu0 0.0
        %289 = vmatpush1.msra.mxu0 0.0
        %290 = vmatprep.subr.mxu0 0.0
        %291 = vmatpush1.msra.mxu0 0.0
        %292 = vmatprep.subr.mxu0 0.0
        %293 = vmatpush1.msra.mxu0 0.0
        %294 = vmatprep.subr.mxu0 0.0
        %295 = vmatpush1.msra.mxu0 0.0
        %296 = vmatprep.subr.mxu0 0.0
        %297 = vmatpush1.msra.mxu0 0.0
        %298 = vmatprep.subr.mxu0 0.0
        %299 = vmatpush1.msra.mxu0 0.0
        %300 = vmatprep.subr.mxu0 0.0
        %301 = vmatpush1.msra.mxu0 0.0
        %302 = vmatprep.subr.mxu0 0.0
        %303 = vmatpush1.msra.mxu0 0.0
        %304 = vmatprep.subr.mxu0 0.0
        %305 = vmatpush1.msra.mxu0 0.0
        %306 = vmatprep.subr.mxu0 0.0
        %307 = vmatpush1.msra.mxu0 0.0
        %308 = vmatprep.subr.mxu0 0.0
        %309 = vmatpush1.msra.mxu0 0.0
        %310 = vmatprep.subr.mxu0 0.0
        %311 = vmatpush1.msra.mxu0 0.0
        %312 = vmatprep.mubr.f32.mxu0 0.0
        %313 = vmatmul.mubr.f32.gmra.mrb[0].mxu0 %v243
        %v314 = vpop.f32.mrb[0].mxu0
        %v315 = vadd.f32 %v239, %v314
        %v316 = vpop.f32.mrb[0].mxu0
        %317 = vmatprep.mubr.f32.mxu0 0.0
        %318 = vmatmul.mubr.f32.gmra.mrb[0].mxu0 %v246
        %v319 = vpop.f32.mrb[0].mxu0
        %v320 = vadd.f32 %v239, %v319
        %v321 = vpop.f32.mrb[0].mxu0
        %322 = vdwg.mxu0
        %v323 = vtanh.pop %v315
        %v324 = vtanh.pop %v320
        %v325 = vld [vmem:[%s3] sm:$0x1]
        %v327 = vlaneseq
        %v328 = vshrl.u32 %v327, 7
        %v329 = vsub.s32 0, %v328
        %v330 = vrot.slane %v325, %v329
        %v332 = vmul.f32 %v323, %v330
        %v333 = vmul.f32 %v324, %v330
        %vm334 = vcmask 130048
        %v335 = vsel %vm334, %v332, 0.0
        %336 = vadd.xlane.f32.xlu0 %v335
        %v337 = vpop.xlane.xlu0 %336
        %v338 = vsel %vm334, %v333, 0.0
        %339 = vadd.xlane.f32.xlu0 %v338
        %v340 = vpop.xlane.xlu0 %339
        %v341 = vld [vmem:[#allocation2] sm:$0x1]
        %v343 = vlaneseq
        %v344 = vshrl.u32 %v343, 7
        %v345 = vsub.s32 0, %v344
        %v346 = vrot.slane %v341, %v345
        %v348 = vadd.f32 %v337, %v346
        %v349 = vadd.f32 %v340, %v346
        %vm350 = vcmask 7168
        %v351 = vsel %vm350, %v348, -inf
        %v352 = vrot.slane %v351, 4
        %v353 = vmax.f32 %v351, %v352
        %v354 = vrot.slane %v353, 2
        %v355 = vmax.f32 %v353, %v354
        %v356 = vrot.slane %v355, 1
        %v357 = vmax.f32 %v355, %v356
        %v358 = vsel %vm350, %v349, -inf
        %v359 = vrot.slane %v358, 4
        %v360 = vmax.f32 %v358, %v359
        %v361 = vrot.slane %v360, 2
        %v362 = vmax.f32 %v360, %v361
        %v363 = vrot.slane %v362, 1
        %v364 = vmax.f32 %v362, %v363
        %v365 = vsub.f32 %v348, %v357
        %v366 = vsub.f32 %v349, %v364
        %v367 = vmul.f32 %v365, 1.442695
        %v368 = vpow.pop %v367
        %v369 = vmul.f32 %v366, 1.442695
        %v370 = vpow.pop %v369
        %v371 = vsel %vm350, %v368, 0.0
        %v372 = vrot.slane %v371, 4
        %v373 = vadd.f32 %v371, %v372
        %v374 = vrot.slane %v373, 2
        %v375 = vadd.f32 %v373, %v374
        %v376 = vrot.slane %v375, 1
        %v377 = vadd.f32 %v375, %v376
        %v378 = vsel %vm350, %v370, 0.0
        %v379 = vrot.slane %v378, 4
        %v380 = vadd.f32 %v378, %v379
        %v381 = vrot.slane %v380, 2
        %v382 = vadd.f32 %v380, %v381
        %v383 = vrot.slane %v382, 1
        %v384 = vadd.f32 %v382, %v383
        %v385 = vrcp.pop %v377
        %v386 = vrcp.pop %v384
        %v387 = vmul.f32 %v368, %v385
        %v388 = vmul.f32 %v370, %v386
        %390 = vset.pattern.permute.xlu0 0
        %391 = vperm.xlu0 %390, %v387
        %v392 = vpop.permute.xlu0 %391
        %395 = vset.pattern.permute.xlu0 0
        %396 = vperm.xlu0 %395, %v388
        %v397 = vpop.permute.xlu0 %396
        %v399 = vmul.f32 %v228, %v392
        %v400 = vmul.f32 %v229, %v397
        %401 = vst.msk [vmem:[%s220] sm:$0xff] %vm241, %v399
        %402 = vst.msk [vmem:[%s220 + $0x8] sm:$0xff] %vm241, %v400
        %s403 = sand.u32 %s139, 1
        %s404 = scalar_lea.sflag [#allocation4], %s403
        %s405 = sand.u32 %s139, 1
        %s406 = smul.addr %s405, 16
        %s407 = scalar_lea.vmem [#allocation3], %s406
        // Predicated region
        $region41: #{tpu_custom_call.1} parent=39 // pred_check
          %p408 = pneg %p149
        $region42: #{tpu_custom_call.1} parent=39 // pred_check_branch
          %410 = sbr.rel (%p408) target = $region44
        $region43: #{tpu_custom_call.1} parent=39 // pred_region
          %s411 = smul.u32 2, %s21
          %s413 = ssub.s32 256, 256
          %414 = vsyncadd %s404, %s413
          %s415 = smul.addr %s411, 128
          %s416 = scalar_lea.hbm %s5, %s415
          %s417 = sshll.u32 %s407, 4
          %s418 = int_to_ptr.vmem [resolvable:$true] %s417
          %423 = dma.vmem_to_hbm [thread:$0]  %s418, 256, %s416, %s404, 128, 128, 8
        $region44: #{tpu_custom_call.1} parent=39 // pred_fallthru
          _
      $region40: #{tpu_custom_call.1} parent=5 // pred_fallthru
        _
      %p424 = scmp.le.s32.totalorder 2, %s16
      // Predicated region
      $region45: #{tpu_custom_call.1} parent=5 // pred_check
        %p425 = pneg %p424
      $region46: #{tpu_custom_call.1} parent=5 // pred_check_branch
        %427 = sbr.rel (%p425) target = $region48
      $region47: #{tpu_custom_call.1} parent=5 // pred_region
        %s428 = ssub.s32 %s16, 2
        // Predicated region
        $region49: #{tpu_custom_call.1} parent=47 // pred_check
          %p429 = pneg %p155
        $region50: #{tpu_custom_call.1} parent=47 // pred_check_branch
          %431 = sbr.rel (%p429) target = $region52
        $region51: #{tpu_custom_call.1} parent=47 // pred_region
          %s432 = sand.u32 %s140, 1
          %s433 = scalar_lea.sflag [#allocation4], %s432
          %s434 = sand.u32 %s140, 1
          %s435 = smul.addr %s434, 16
          %s436 = scalar_lea.vmem [#allocation3], %s435
          %437 = dma.done %s433, 256
        $region52: #{tpu_custom_call.1} parent=47 // pred_fallthru
          _
      $region48: #{tpu_custom_call.1} parent=5 // pred_fallthru
        _
    $region6: #{tpu_custom_call.1} parent=1 // loop_footer
      %s20 = sadd.s32 1, %s16
    $region7: #{tpu_custom_call.1} parent=1 // loop_footer_branch
      %15 = sbr.rel target = $region3
    $region8: #{tpu_custom_call.1} parent=1 // loop_exit
      _
    %438 = vsyncpa [#allocation4], 1
    %s439 = scalar_lea.sflag [#allocation4], 1
    %440 = vsyncpa %s439, 1

</llo_original>
